<compile_context>
chip_gen: v6e
topology: v6e:2x2x1
jax: 0.10.0
libtpu: 0.0.40
codegen_flags: <defaults>
</compile_context>

<pallas_src>
import math

import jax
import jax.numpy as jnp
from jax import lax
from jax.experimental import pallas as pl
from jax.experimental.pallas import tpu as pltpu


def _ceil_to(x: int, m: int) -> int:
    return ((x + m - 1) // m) * m


# ----------------------------------------------------------------------------
# Fused kernel: transposed (batch-on-lanes) MLP forward + Gumbel-max sample.
#   x_ref      (In, TB)  bf16   state tile (batch on lane axis)
#   g_ref      (O,  TB)  f32    Gumbel noise tile
#   w*_ref     (out, in) bf16   PyTorch-layout weights, VMEM-resident
#   b*_ref     (out, 1)  f32    biases (broadcast along lanes)
#   logits_ref (O,  TB)  f32
#   action_ref (1,  TB)  int32
# ----------------------------------------------------------------------------
def policy_fwd_kernel(x_ref, g_ref, w0_ref, b0_ref, w1_ref, b1_ref,
                      w2_ref, b2_ref, logits_ref, action_ref):
    x = x_ref[...]                                                   # (In, TB)

    # Layer 0: h0^T = W0 @ x^T + b0 ; ReLU   (bf16 MXU inputs, f32 accumulate)
    h = jnp.dot(w0_ref[...], x, preferred_element_type=jnp.float32)
    h = jnp.maximum(h + b0_ref[...], 0.0)                            # (H, TB)

    # Layer 1: Linear(hidden, hidden) + ReLU
    h = jnp.dot(w1_ref[...], h.astype(jnp.bfloat16),
                preferred_element_type=jnp.float32)
    h = jnp.maximum(h + b1_ref[...], 0.0)                            # (H, TB)

    # Output layer -> Categorical logits (classes on sublanes)
    logits = jnp.dot(w2_ref[...], h.astype(jnp.bfloat16),
                     preferred_element_type=jnp.float32)
    logits = logits + b2_ref[...]                                    # (O, TB)
    logits_ref[...] = logits

    # Categorical(logits).sample() == argmax(logits + Gumbel).  argmax over the
    # tiny sublane axis implemented with max/min reductions (lane-dense).
    z = logits + g_ref[...]                                          # (O, TB)
    ids = lax.broadcasted_iota(jnp.int32, z.shape, 0)
    zmax = jnp.max(z, axis=0, keepdims=True)                         # (1, TB)
    action = jnp.min(jnp.where(z >= zmax, ids, jnp.int32(z.shape[0])),
                     axis=0, keepdims=True)                          # (1, TB)
    action_ref[...] = action


# ----------------------------------------------------------------------------
# Wrapper
# ----------------------------------------------------------------------------
def policy_forward(state, params, seed, *, block_b=1024):
    """Fused Policy forward.

    Returns (action (B,) int32, logits (B, O) float32)."""
    assert len(params) == 6, "kernel is specialized for hidden_layers=2"
    B, In = state.shape
    w0, b0, w1, b1, w2, b2 = params
    H = w0.shape[0]
    O = w2.shape[0]

    # bf16 state halves the dominant HBM read (kernel math is bf16 anyway).
    x_t = state.astype(jnp.bfloat16).T                               # (In, B)

    # Gumbel noise for Categorical sampling, generated per *real* row so the
    # drawn actions do not depend on padding / tile shape.
    g = jax.random.gumbel(jax.random.PRNGKey(seed), (B, O), jnp.float32).T

    # Batch tiling: batch lives on the lane (last) axis.  Use large tiles to
    # amortize per-grid-step overhead; keep >=2 tiles when the batch is big
    # enough so the "parallel" axis can span both v7x TensorCores.
    Bp = _ceil_to(B, 128)
    TB = min(block_b, Bp)
    if TB == Bp and Bp >= 256:
        TB = _ceil_to(Bp // 2, 128)
    Bp = _ceil_to(Bp, TB)
    num_tiles = Bp // TB

    if Bp != B:
        x_t = jnp.pad(x_t, ((0, 0), (0, Bp - B)))
        g = jnp.pad(g, ((0, 0), (0, Bp - B)))

    grid_spec = pltpu.PrefetchScalarGridSpec(
        num_scalar_prefetch=0,
        grid=(num_tiles,),
        in_specs=[
            pl.BlockSpec((In, TB), lambda i: (0, i)),   # state^T tile
            pl.BlockSpec((O, TB), lambda i: (0, i)),    # gumbel^T tile
            pl.BlockSpec(w0.shape, lambda i: (0, 0)),   # resident weights
            pl.BlockSpec(b0.shape, lambda i: (0, 0)),
            pl.BlockSpec(w1.shape, lambda i: (0, 0)),
            pl.BlockSpec(b1.shape, lambda i: (0, 0)),
            pl.BlockSpec(w2.shape, lambda i: (0, 0)),
            pl.BlockSpec(b2.shape, lambda i: (0, 0)),
        ],
        out_specs=(
            pl.BlockSpec((O, TB), lambda i: (0, i)),    # logits^T (lane-dense)
            pl.BlockSpec((1, TB), lambda i: (0, i)),    # actions  (lane-dense)
        ),
    )

    cost = pl.CostEstimate(
        flops=2 * Bp * (In * H + H * H + H * O),
        transcendentals=0,
        bytes_accessed=(Bp * In * 2                     # bf16 state
                        + Bp * O * 4                    # gumbel noise
                        + 2 * (In * H + H * H + H * O)  # bf16 weights
                        + 4 * (2 * H + O)               # f32 biases
                        + Bp * O * 4 + Bp * 4),         # logits + action out
    )

    logits_t, action_t = pl.pallas_call(
        policy_fwd_kernel,
        out_shape=(
            jax.ShapeDtypeStruct((O, Bp), jnp.float32),
            jax.ShapeDtypeStruct((1, Bp), jnp.int32),
        ),
        grid_spec=grid_spec,
        compiler_params=pltpu.CompilerParams(
            dimension_semantics=("parallel",)),         # v7x: tiles across 2 TCs
        cost_estimate=cost,
    )(x_t, g, w0, b0, w1, b1, w2, b2)

    action = action_t[0, :B]                            # (B,)
    logits = logits_t[:, :B].T                          # (B, O)
    return action, logits


# ----------------------------------------------------------------------------
# Deterministic parameter init (matches nn.init.xavier_uniform_ + zero bias).
# Weights stored in PyTorch (out, in) layout, bf16 (MXU-native operand);
# biases stored as (out, 1) f32 so they broadcast along the lane axis.
# ----------------------------------------------------------------------------
def xavier_uniform(key, fan_in, fan_out):
    bound = math.sqrt(6.0 / (fan_in + fan_out))
    w = jax.random.uniform(key, (fan_out, fan_in), jnp.float32,
                           minval=-bound, maxval=bound)
    return w.astype(jnp.bfloat16)


def init_policy_params(key, input_size, output_size, hidden_size, hidden_layers):
    sizes = [input_size] + [hidden_size] * hidden_layers + [output_size]
    keys = jax.random.split(key, len(sizes) - 1)
    params = []
    for k, (fi, fo) in zip(keys, zip(sizes[:-1], sizes[1:])):
        params.append(xavier_uniform(k, fi, fo))          # weight (out, in) bf16
        params.append(jnp.zeros((fo, 1), jnp.float32))     # bias column
    return tuple(params)


# ----------------------------------------------------------------------------
if __name__ == "__main__":
    input_size, output_size = 16, 8
    hidden_size, hidden_layers = 32, 2
    batch = 200      # not a multiple of 128 -> exercises padding + 2-tile grid

    key = jax.random.PRNGKey(0)
    k_param, k_state = jax.random.split(key, 2)

    params = init_policy_params(k_param, input_size, output_size,
                                hidden_size, hidden_layers)
    state = jax.random.normal(k_state, (batch, input_size), jnp.float32)

    action, logits = policy_forward(state, params, seed=1234)
    jax.block_until_ready((action, logits))

    # --- sanity checks -------------------------------------------------------
    # 1) Logits vs. a pure-JAX reference of the same bf16-input / f32-acc math.
    w0, b0, w1, b1, w2, b2 = params
    xT = state.astype(jnp.bfloat16).T
    h = jnp.maximum(jnp.dot(w0, xT, preferred_element_type=jnp.float32) + b0, 0.0)
    h = jnp.maximum(jnp.dot(w1, h.astype(jnp.bfloat16),
                            preferred_element_type=jnp.float32) + b1, 0.0)
    ref_logits = (jnp.dot(w2, h.astype(jnp.bfloat16),
                          preferred_element_type=jnp.float32) + b2).T
    assert logits.shape == (batch, output_size)
    assert jnp.allclose(logits, ref_logits, rtol=1e-2, atol=1e-2), "logits mismatch"

    # 2) Sampled actions: valid indices, deterministic per seed, and agree with
    #    the pure-JAX Gumbel-max reference drawn from the same noise.
    assert action.shape == (batch,) and action.dtype == jnp.int32
    assert bool(jnp.all((action >= 0) & (action < output_size)))
    gum = jax.random.gumbel(jax.random.PRNGKey(1234), (batch, output_size),
                            jnp.float32)
    ref_action = jnp.argmax(ref_logits + gum, axis=-1).astype(jnp.int32)
    match = float(jnp.mean((action == ref_action).astype(jnp.float32)))
    assert match >= 0.95, f"action agreement too low: {match}"
    action2, _ = policy_forward(state, params, seed=1234)
    assert jnp.array_equal(action, action2), "sampling not deterministic per seed"

    print("KERNEL_OK")
</pallas_src>

<mosaic_0001>
module attributes {stable_mosaic.version = 11 : i64} {
  func.func @policy_fwd_kernel(%arg0: i32, %arg1: memref<16x128xbf16, #tpu.memory_space<vmem>>, %arg2: memref<8x128xf32, #tpu.memory_space<vmem>>, %arg3: memref<32x16xbf16, #tpu.memory_space<vmem>>, %arg4: memref<32x1xf32, #tpu.memory_space<vmem>>, %arg5: memref<32x32xbf16, #tpu.memory_space<vmem>>, %arg6: memref<32x1xf32, #tpu.memory_space<vmem>>, %arg7: memref<8x32xbf16, #tpu.memory_space<vmem>>, %arg8: memref<8x1xf32, #tpu.memory_space<vmem>>, %arg9: memref<8x128xf32, #tpu.memory_space<vmem>>, %arg10: memref<1x128xi32, #tpu.memory_space<vmem>>) attributes {dimension_semantics = [#tpu.dimension_semantics<parallel>], iteration_bounds = array<i64: 2>, scalar_prefetch = 0 : i64, scratch_operands = 0 : i64, tpu.core_type = #tpu.core_type<tc>, window_params = [{transform_indices = @transform_0, window_bounds = array<i64: 16, 128>}, {transform_indices = @transform_1, window_bounds = array<i64: 8, 128>}, {pipeline_mode = #tpu.pipeline_mode<synchronous>, transform_indices = @transform_2, window_bounds = array<i64: 32, 16>}, {pipeline_mode = #tpu.pipeline_mode<synchronous>, transform_indices = @transform_3, window_bounds = array<i64: 32, 1>}, {pipeline_mode = #tpu.pipeline_mode<synchronous>, transform_indices = @transform_4, window_bounds = array<i64: 32, 32>}, {pipeline_mode = #tpu.pipeline_mode<synchronous>, transform_indices = @transform_5, window_bounds = array<i64: 32, 1>}, {pipeline_mode = #tpu.pipeline_mode<synchronous>, transform_indices = @transform_6, window_bounds = array<i64: 8, 32>}, {pipeline_mode = #tpu.pipeline_mode<synchronous>, transform_indices = @transform_7, window_bounds = array<i64: 8, 1>}, {transform_indices = @transform_8, window_bounds = array<i64: 8, 128>}, {transform_indices = @transform_9, window_bounds = array<i64: 1, 128>}]} {
    %c0 = arith.constant 0 : index
    %c0_0 = arith.constant 0 : index
    %0 = vector.load %arg1[%c0, %c0_0] : memref<16x128xbf16, #tpu.memory_space<vmem>>, vector<16x128xbf16>
    %c0_1 = arith.constant 0 : index
    %c0_2 = arith.constant 0 : index
    %1 = vector.load %arg3[%c0_1, %c0_2] : memref<32x16xbf16, #tpu.memory_space<vmem>>, vector<32x16xbf16>
    %cst = arith.constant dense<0.000000e+00> : vector<32x128xf32>
    %2 = tpu.matmul %1, %0, %cst {dimension_numbers = #tpu.dot_dimension_numbers<[1], [0], [0], [1], [0, 0, 1, 1], [], []>} : vector<32x16xbf16>, vector<16x128xbf16>, vector<32x128xf32> -> vector<32x128xf32>
    %c0_3 = arith.constant 0 : index
    %c0_4 = arith.constant 0 : index
    %3 = vector.load %arg4[%c0_3, %c0_4] : memref<32x1xf32, #tpu.memory_space<vmem>>, vector<32x1xf32>
    %4 = vector.broadcast %3 : vector<32x1xf32> to vector<32x128xf32>
    %5 = arith.addf %2, %4 : vector<32x128xf32>
    %cst_5 = arith.constant 0.000000e+00 : f32
    %6 = vector.broadcast %cst_5 : f32 to vector<32x128xf32>
    %7 = arith.maximumf %5, %6 : vector<32x128xf32>
    %c0_6 = arith.constant 0 : index
    %c0_7 = arith.constant 0 : index
    %8 = vector.load %arg5[%c0_6, %c0_7] : memref<32x32xbf16, #tpu.memory_space<vmem>>, vector<32x32xbf16>
    %9 = arith.truncf %7 : vector<32x128xf32> to vector<32x128xbf16>
    %cst_8 = arith.constant dense<0.000000e+00> : vector<32x128xf32>
    %10 = tpu.matmul %8, %9, %cst_8 {dimension_numbers = #tpu.dot_dimension_numbers<[1], [0], [0], [1], [0, 0, 1, 1], [], []>} : vector<32x32xbf16>, vector<32x128xbf16>, vector<32x128xf32> -> vector<32x128xf32>
    %c0_9 = arith.constant 0 : index
    %c0_10 = arith.constant 0 : index
    %11 = vector.load %arg6[%c0_9, %c0_10] : memref<32x1xf32, #tpu.memory_space<vmem>>, vector<32x1xf32>
    %12 = vector.broadcast %11 : vector<32x1xf32> to vector<32x128xf32>
    %13 = arith.addf %10, %12 : vector<32x128xf32>
    %cst_11 = arith.constant 0.000000e+00 : f32
    %14 = vector.broadcast %cst_11 : f32 to vector<32x128xf32>
    %15 = arith.maximumf %13, %14 : vector<32x128xf32>
    %c0_12 = arith.constant 0 : index
    %c0_13 = arith.constant 0 : index
    %16 = vector.load %arg7[%c0_12, %c0_13] : memref<8x32xbf16, #tpu.memory_space<vmem>>, vector<8x32xbf16>
    %17 = arith.truncf %15 : vector<32x128xf32> to vector<32x128xbf16>
    %cst_14 = arith.constant dense<0.000000e+00> : vector<8x128xf32>
    %18 = tpu.matmul %16, %17, %cst_14 {dimension_numbers = #tpu.dot_dimension_numbers<[1], [0], [0], [1], [0, 0, 1, 1], [], []>} : vector<8x32xbf16>, vector<32x128xbf16>, vector<8x128xf32> -> vector<8x128xf32>
    %c0_15 = arith.constant 0 : index
    %c0_16 = arith.constant 0 : index
    %19 = vector.load %arg8[%c0_15, %c0_16] : memref<8x1xf32, #tpu.memory_space<vmem>>, vector<8x1xf32>
    %20 = vector.broadcast %19 : vector<8x1xf32> to vector<8x128xf32>
    %21 = arith.addf %18, %20 : vector<8x128xf32>
    %c0_17 = arith.constant 0 : index
    %c0_18 = arith.constant 0 : index
    %22 = vector.load %arg9[%c0_17, %c0_18] : memref<8x128xf32, #tpu.memory_space<vmem>>, vector<8x128xf32>
    tpu.vector_store %arg9[%c0_17, %c0_18], %21 {strides = array<i32>} : memref<8x128xf32, #tpu.memory_space<vmem>>, vector<8x128xf32>,
    %c0_19 = arith.constant 0 : index
    %c0_20 = arith.constant 0 : index
    %23 = vector.load %arg2[%c0_19, %c0_20] : memref<8x128xf32, #tpu.memory_space<vmem>>, vector<8x128xf32>
    %24 = arith.addf %21, %23 : vector<8x128xf32>
    %25 = tpu.iota {dimensions = array<i32: 0>} : vector<8x128xi32>
    %cst_21 = arith.constant dense<0xFF800000> : vector<128xf32>
    %26 = vector.multi_reduction <maximumf>, %24, %cst_21 [0] : vector<8x128xf32> to vector<128xf32>
    %27 = vector.shape_cast %26 : vector<128xf32> to vector<1x128xf32>
    %28 = vector.broadcast %27 : vector<1x128xf32> to vector<8x128xf32>
    %29 = arith.cmpf oge, %24, %28 : vector<8x128xf32>
    %c8_i32 = arith.constant 8 : i32
    %30 = vector.broadcast %c8_i32 : i32 to vector<8x128xi32>
    %31 = arith.select %29, %25, %30 : vector<8x128xi1>, vector<8x128xi32>
    %cst_22 = arith.constant dense<2147483647> : vector<128xi32>
    %32 = vector.multi_reduction <minsi>, %31, %cst_22 [0] : vector<8x128xi32> to vector<128xi32>
    %33 = vector.shape_cast %32 : vector<128xi32> to vector<1x128xi32>
    %c0_23 = arith.constant 0 : index
    %c0_24 = arith.constant 0 : index
    %34 = vector.load %arg10[%c0_23, %c0_24] : memref<1x128xi32, #tpu.memory_space<vmem>>, vector<1x128xi32>
    tpu.vector_store %arg10[%c0_23, %c0_24], %33 {strides = array<i32>} : memref<1x128xi32, #tpu.memory_space<vmem>>, vector<1x128xi32>,
    return
  }
  func.func @transform_0(%arg0: i32) -> (i32, i32) {
    %c0_i32 = arith.constant 0 : i32
    %c0_i32_0 = arith.constant 0 : i32
    return %c0_i32, %arg0 : i32, i32
  }
  func.func @transform_1(%arg0: i32) -> (i32, i32) {
    %c0_i32 = arith.constant 0 : i32
    %c0_i32_0 = arith.constant 0 : i32
    return %c0_i32, %arg0 : i32, i32
  }
  func.func @transform_2(%arg0: i32) -> (i32, i32) {
    %c0_i32 = arith.constant 0 : i32
    %c0_i32_0 = arith.constant 0 : i32
    %c0_i32_1 = arith.constant 0 : i32
    return %c0_i32, %c0_i32_0 : i32, i32
  }
  func.func @transform_3(%arg0: i32) -> (i32, i32) {
    %c0_i32 = arith.constant 0 : i32
    %c0_i32_0 = arith.constant 0 : i32
    %c0_i32_1 = arith.constant 0 : i32
    return %c0_i32, %c0_i32_0 : i32, i32
  }
  func.func @transform_4(%arg0: i32) -> (i32, i32) {
    %c0_i32 = arith.constant 0 : i32
    %c0_i32_0 = arith.constant 0 : i32
    %c0_i32_1 = arith.constant 0 : i32
    return %c0_i32, %c0_i32_0 : i32, i32
  }
  func.func @transform_5(%arg0: i32) -> (i32, i32) {
    %c0_i32 = arith.constant 0 : i32
    %c0_i32_0 = arith.constant 0 : i32
    %c0_i32_1 = arith.constant 0 : i32
    return %c0_i32, %c0_i32_0 : i32, i32
  }
  func.func @transform_6(%arg0: i32) -> (i32, i32) {
    %c0_i32 = arith.constant 0 : i32
    %c0_i32_0 = arith.constant 0 : i32
    %c0_i32_1 = arith.constant 0 : i32
    return %c0_i32, %c0_i32_0 : i32, i32
  }
  func.func @transform_7(%arg0: i32) -> (i32, i32) {
    %c0_i32 = arith.constant 0 : i32
    %c0_i32_0 = arith.constant 0 : i32
    %c0_i32_1 = arith.constant 0 : i32
    return %c0_i32, %c0_i32_0 : i32, i32
  }
  func.func @transform_8(%arg0: i32) -> (i32, i32) {
    %c0_i32 = arith.constant 0 : i32
    %c0_i32_0 = arith.constant 0 : i32
    return %c0_i32, %arg0 : i32, i32
  }
  func.func @transform_9(%arg0: i32) -> (i32, i32) {
    %c0_i32 = arith.constant 0 : i32
    %c0_i32_0 = arith.constant 0 : i32
    return %c0_i32, %arg0 : i32, i32
  }
}

</mosaic_0001>

<llo_original>
// kernel: tpu_custom_call.1
$region0: #{tpu_custom_call.1}
  #allocation0 [shape = 'u32[]', space=smem, size = 0x4, offset = 0x4, fixed_abs, tag = 'smem constant byte address 0x4 - core index']
  #allocation1 [shape = 'u32[144,128]{1,0:T(1,128)}', space=vmem, size = 0x12000, scoped, tag = 'internal scratch']
  %s0 = inlined_call_operand.vmem [shape: bf16[16,256], index: 0, kind: input, shape index: {}]
  %s1 = inlined_call_operand.vmem [shape: f32[8,256], index: 1, kind: input, shape index: {}]
  %s2 = inlined_call_operand.vmem [shape: bf16[32,16], index: 2, kind: input, shape index: {}]
  %s3 = inlined_call_operand.vmem [shape: f32[32,1], index: 3, kind: input, shape index: {}]
  %s4 = inlined_call_operand.vmem [shape: bf16[32,32], index: 4, kind: input, shape index: {}]
  %s5 = inlined_call_operand.vmem [shape: f32[32,1], index: 5, kind: input, shape index: {}]
  %s6 = inlined_call_operand.vmem [shape: bf16[8,32], index: 6, kind: input, shape index: {}]
  %s7 = inlined_call_operand.vmem [shape: f32[8,1], index: 7, kind: input, shape index: {}]
  %s8 = inlined_call_operand.hbm [shape: f32[8,256], index: 8, kind: output, shape index: {0}]
  %s9 = inlined_call_operand.hbm [shape: s32[1,256], index: 9, kind: output, shape index: {1}]
  %10 = xla_tuple %s8, %s9
  %s11 = sld [smem:[#allocation0]]
  $region114: #{tpu_custom_call.1} parent=0
    _
  %s13 = ssub.s32 1, %s11
  %s14 = scalar_select 0, %s13, %s11
  $region1: #{tpu_custom_call.1} parent=0
    #allocation2 [shape = 'u8[8192]{0}', space=vmem, size = 0x2000, scoped, tag = 'input window, operand 0']
    #allocation3 [shape = 'u8[8192]{0}', space=vmem, size = 0x2000, scoped, tag = 'output window, operand 0']
    #allocation4 [shape = 's32[2]{0}', space=sflag, size = 0x8, scoped, tag = 'scoped memory for tpu_custom_call.1']
    #allocation5 [shape = 'u8[1024]{0}', space=vmem, size = 0x400, scoped, tag = 'output window, operand 1']
    #allocation6 [shape = 's32[2]{0}', space=sflag, size = 0x8, scoped, tag = 'scoped memory for tpu_custom_call.1']
    %15 = vsyncpa [#allocation4], 0
    %s16 = scalar_lea.sflag [#allocation4], 1
    %17 = vsyncpa %s16, 0
    %18 = vsyncpa [#allocation6], 0
    %s19 = scalar_lea.sflag [#allocation6], 1
    %20 = vsyncpa %s19, 0
    loop: start=0, step=1, limit=4
    $region2: #{tpu_custom_call.1} parent=1 // loop_pre_header
      _
    $region3: #{tpu_custom_call.1} parent=1 // loop_header
      %s22 = sphi 0, %s26
      %p23 = scmp.ge.s32.totalorder %s22, 4
      %s32 = sphi 0, %s34
      %s35 = sphi 0, %s32
      %s36 = sphi 0, %s35
      %s52 = sphi 0, %s36
      %s58 = sphi 0, %s60
      %s61 = sphi 0, %s58
      %s62 = sphi 0, %s61
      %s78 = sphi 0, %s62
      %s82 = sphi 0, %s82
      %s84 = sphi 0, %s82
      %s85 = sphi 0, %s84
      %s99 = sphi 0, %s85
      %s103 = sphi 0, %s103
      %s105 = sphi 0, %s103
      %s106 = sphi 0, %s105
      %s120 = sphi 0, %s106
      %s124 = sphi 0, %s124
      %s126 = sphi 0, %s124
      %s127 = sphi 0, %s126
      %s141 = sphi 0, %s127
      %s145 = sphi 0, %s145
      %s147 = sphi 0, %s145
      %s148 = sphi 0, %s147
      %s162 = sphi 0, %s148
      %s166 = sphi 0, %s166
      %s168 = sphi 0, %s166
      %s169 = sphi 0, %s168
      %s183 = sphi 0, %s169
      %s187 = sphi 0, %s187
      %s189 = sphi 0, %s187
      %s190 = sphi 0, %s189
      %s204 = sphi 0, %s190
      %s210 = sphi 0, %s212
      %s213 = sphi 0, %s210
      %s214 = sphi 0, %s213
      %s230 = sphi 0, %s214
      %s236 = sphi 0, %s238
      %s239 = sphi 0, %s236
      %s240 = sphi 0, %s239
      %s256 = sphi 0, %s240
    $region4: #{tpu_custom_call.1} parent=1 // loop_header_branch
      %25 = sbr.rel (%p23) target = $region8
    $region5: #{tpu_custom_call.1} parent=1 // loop_body
      %s27 = ssub.s32 %s22, 1
      %s28 = ssub.s32 %s22, 2
      %s29 = sadd.s32 %s22, 1
      %s30 = ssub.s32 %s22, %s29
      %p31 = scmp.eq.s32.totalorder %s30, 0
      %s33 = sadd.s32 %s32, 1
      %s34 = scalar_select %p31, %s32, %s33
      %p37 = pneg %p31
      %p38 = scmp.eq.s32.totalorder %s22, 1
      %p39 = por %p37, %p38
      %p40 = scmp.ne.s32.totalorder %s32, %s35
      %p41 = scmp.eq.s32.totalorder %s22, 0
      %p42 = por %p40, %p41
      %p43 = scmp.ne.s32.totalorder %s32, %s35
      %p44 = scmp.eq.s32.totalorder %s27, 1
      %p45 = por %p43, %p44
      %p46 = scmp.ne.s32.totalorder %s35, %s36
      %p47 = scmp.eq.s32.totalorder %s27, 0
      %p48 = por %p46, %p47
      %p49 = scmp.ne.s32.totalorder %s35, %s36
      %p50 = scmp.eq.s32.totalorder %s28, 1
      %p51 = por %p49, %p50
      %p53 = scmp.ne.s32.totalorder %s36, %s52
      %p54 = scmp.eq.s32.totalorder %s28, 0
      %p55 = por %p53, %p54
      %s56 = ssub.s32 %s22, %s29
      %p57 = scmp.eq.s32.totalorder %s56, 0
      %s59 = sadd.s32 %s58, 1
      %s60 = scalar_select %p57, %s58, %s59
      %p63 = pneg %p57
      %p64 = scmp.eq.s32.totalorder %s22, 1
      %p65 = por %p63, %p64
      %p66 = scmp.ne.s32.totalorder %s58, %s61
      %p67 = scmp.eq.s32.totalorder %s22, 0
      %p68 = por %p66, %p67
      %p69 = scmp.ne.s32.totalorder %s58, %s61
      %p70 = scmp.eq.s32.totalorder %s27, 1
      %p71 = por %p69, %p70
      %p72 = scmp.ne.s32.totalorder %s61, %s62
      %p73 = scmp.eq.s32.totalorder %s27, 0
      %p74 = por %p72, %p73
      %p75 = scmp.ne.s32.totalorder %s61, %s62
      %p76 = scmp.eq.s32.totalorder %s28, 1
      %p77 = por %p75, %p76
      %p79 = scmp.ne.s32.totalorder %s62, %s78
      %p80 = scmp.eq.s32.totalorder %s28, 0
      %p81 = por %p79, %p80
      %s83 = sadd.s32 %s82, 1
      %p86 = scmp.eq.s32.totalorder %s22, 1
      %p87 = scmp.ne.s32.totalorder %s82, %s84
      %p88 = scmp.eq.s32.totalorder %s22, 0
      %p89 = por %p87, %p88
      %p90 = scmp.ne.s32.totalorder %s82, %s84
      %p91 = scmp.eq.s32.totalorder %s27, 1
      %p92 = por %p90, %p91
      %p93 = scmp.ne.s32.totalorder %s84, %s85
      %p94 = scmp.eq.s32.totalorder %s27, 0
      %p95 = por %p93, %p94
      %p96 = scmp.ne.s32.totalorder %s84, %s85
      %p97 = scmp.eq.s32.totalorder %s28, 1
      %p98 = por %p96, %p97
      %p100 = scmp.ne.s32.totalorder %s85, %s99
      %p101 = scmp.eq.s32.totalorder %s28, 0
      %p102 = por %p100, %p101
      %s104 = sadd.s32 %s103, 1
      %p107 = scmp.eq.s32.totalorder %s22, 1
      %p108 = scmp.ne.s32.totalorder %s103, %s105
      %p109 = scmp.eq.s32.totalorder %s22, 0
      %p110 = por %p108, %p109
      %p111 = scmp.ne.s32.totalorder %s103, %s105
      %p112 = scmp.eq.s32.totalorder %s27, 1
      %p113 = por %p111, %p112
      %p114 = scmp.ne.s32.totalorder %s105, %s106
      %p115 = scmp.eq.s32.totalorder %s27, 0
      %p116 = por %p114, %p115
      %p117 = scmp.ne.s32.totalorder %s105, %s106
      %p118 = scmp.eq.s32.totalorder %s28, 1
      %p119 = por %p117, %p118
      %p121 = scmp.ne.s32.totalorder %s106, %s120
      %p122 = scmp.eq.s32.totalorder %s28, 0
      %p123 = por %p121, %p122
      %s125 = sadd.s32 %s124, 1
      %p128 = scmp.eq.s32.totalorder %s22, 1
      %p129 = scmp.ne.s32.totalorder %s124, %s126
      %p130 = scmp.eq.s32.totalorder %s22, 0
      %p131 = por %p129, %p130
      %p132 = scmp.ne.s32.totalorder %s124, %s126
      %p133 = scmp.eq.s32.totalorder %s27, 1
      %p134 = por %p132, %p133
      %p135 = scmp.ne.s32.totalorder %s126, %s127
      %p136 = scmp.eq.s32.totalorder %s27, 0
      %p137 = por %p135, %p136
      %p138 = scmp.ne.s32.totalorder %s126, %s127
      %p139 = scmp.eq.s32.totalorder %s28, 1
      %p140 = por %p138, %p139
      %p142 = scmp.ne.s32.totalorder %s127, %s141
      %p143 = scmp.eq.s32.totalorder %s28, 0
      %p144 = por %p142, %p143
      %s146 = sadd.s32 %s145, 1
      %p149 = scmp.eq.s32.totalorder %s22, 1
      %p150 = scmp.ne.s32.totalorder %s145, %s147
      %p151 = scmp.eq.s32.totalorder %s22, 0
      %p152 = por %p150, %p151
      %p153 = scmp.ne.s32.totalorder %s145, %s147
      %p154 = scmp.eq.s32.totalorder %s27, 1
      %p155 = por %p153, %p154
      %p156 = scmp.ne.s32.totalorder %s147, %s148
      %p157 = scmp.eq.s32.totalorder %s27, 0
      %p158 = por %p156, %p157
      %p159 = scmp.ne.s32.totalorder %s147, %s148
      %p160 = scmp.eq.s32.totalorder %s28, 1
      %p161 = por %p159, %p160
      %p163 = scmp.ne.s32.totalorder %s148, %s162
      %p164 = scmp.eq.s32.totalorder %s28, 0
      %p165 = por %p163, %p164
      %s167 = sadd.s32 %s166, 1
      %p170 = scmp.eq.s32.totalorder %s22, 1
      %p171 = scmp.ne.s32.totalorder %s166, %s168
      %p172 = scmp.eq.s32.totalorder %s22, 0
      %p173 = por %p171, %p172
      %p174 = scmp.ne.s32.totalorder %s166, %s168
      %p175 = scmp.eq.s32.totalorder %s27, 1
      %p176 = por %p174, %p175
      %p177 = scmp.ne.s32.totalorder %s168, %s169
      %p178 = scmp.eq.s32.totalorder %s27, 0
      %p179 = por %p177, %p178
      %p180 = scmp.ne.s32.totalorder %s168, %s169
      %p181 = scmp.eq.s32.totalorder %s28, 1
      %p182 = por %p180, %p181
      %p184 = scmp.ne.s32.totalorder %s169, %s183
      %p185 = scmp.eq.s32.totalorder %s28, 0
      %p186 = por %p184, %p185
      %s188 = sadd.s32 %s187, 1
      %p191 = scmp.eq.s32.totalorder %s22, 1
      %p192 = scmp.ne.s32.totalorder %s187, %s189
      %p193 = scmp.eq.s32.totalorder %s22, 0
      %p194 = por %p192, %p193
      %p195 = scmp.ne.s32.totalorder %s187, %s189
      %p196 = scmp.eq.s32.totalorder %s27, 1
      %p197 = por %p195, %p196
      %p198 = scmp.ne.s32.totalorder %s189, %s190
      %p199 = scmp.eq.s32.totalorder %s27, 0
      %p200 = por %p198, %p199
      %p201 = scmp.ne.s32.totalorder %s189, %s190
      %p202 = scmp.eq.s32.totalorder %s28, 1
      %p203 = por %p201, %p202
      %p205 = scmp.ne.s32.totalorder %s190, %s204
      %p206 = scmp.eq.s32.totalorder %s28, 0
      %p207 = por %p205, %p206
      %s208 = ssub.s32 %s22, %s29
      %p209 = scmp.eq.s32.totalorder %s208, 0
      %s211 = sadd.s32 %s210, 1
      %s212 = scalar_select %p209, %s210, %s211
      %p215 = pneg %p209
      %p216 = scmp.eq.s32.totalorder %s22, 1
      %p217 = por %p215, %p216
      %p218 = scmp.ne.s32.totalorder %s210, %s213
      %p219 = scmp.eq.s32.totalorder %s22, 0
      %p220 = por %p218, %p219
      %p221 = scmp.ne.s32.totalorder %s210, %s213
      %p222 = scmp.eq.s32.totalorder %s27, 1
      %p223 = por %p221, %p222
      %p224 = scmp.ne.s32.totalorder %s213, %s214
      %p225 = scmp.eq.s32.totalorder %s27, 0
      %p226 = por %p224, %p225
      %p227 = scmp.ne.s32.totalorder %s213, %s214
      %p228 = scmp.eq.s32.totalorder %s28, 1
      %p229 = por %p227, %p228
      %p231 = scmp.ne.s32.totalorder %s214, %s230
      %p232 = scmp.eq.s32.totalorder %s28, 0
      %p233 = por %p231, %p232
      %s234 = ssub.s32 %s22, %s29
      %p235 = scmp.eq.s32.totalorder %s234, 0
      %s237 = sadd.s32 %s236, 1
      %s238 = scalar_select %p235, %s236, %s237
      %p241 = pneg %p235
      %p242 = scmp.eq.s32.totalorder %s22, 1
      %p243 = por %p241, %p242
      %p244 = scmp.ne.s32.totalorder %s236, %s239
      %p245 = scmp.eq.s32.totalorder %s22, 0
      %p246 = por %p244, %p245
      %p247 = scmp.ne.s32.totalorder %s236, %s239
      %p248 = scmp.eq.s32.totalorder %s27, 1
      %p249 = por %p247, %p248
      %p250 = scmp.ne.s32.totalorder %s239, %s240
      %p251 = scmp.eq.s32.totalorder %s27, 0
      %p252 = por %p250, %p251
      %p253 = scmp.ne.s32.totalorder %s239, %s240
      %p254 = scmp.eq.s32.totalorder %s28, 1
      %p255 = por %p253, %p254
      %p257 = scmp.ne.s32.totalorder %s240, %s256
      %p258 = scmp.eq.s32.totalorder %s28, 0
      %p259 = por %p257, %p258
      %p260 = scmp.le.s32.totalorder 1, %s22
      %p261 = scmp.lt.s32.totalorder %s22, 3
      %p262 = pnand %p260, %p261
      %p263 = pneg %p262
      // Predicated region
      $region9: #{tpu_custom_call.1} parent=5 // pred_check
        _
      $region10: #{tpu_custom_call.1} parent=5 // pred_check_branch
        %265 = sbr.rel (%p262) target = $region12
      $region11: #{tpu_custom_call.1} parent=5 // pred_region
        %s266 = ssub.s32 %s22, 1
        // Predicated region
        $region13: #{tpu_custom_call.1} parent=11 // pred_check
          %p267 = pneg %p95
        $region14: #{tpu_custom_call.1} parent=11 // pred_check_branch
          %269 = sbr.rel (%p267) target = $region16
        $region15: #{tpu_custom_call.1} parent=11 // pred_region
          _
        $region16: #{tpu_custom_call.1} parent=11 // pred_fallthru
          _
        // Predicated region
        $region17: #{tpu_custom_call.1} parent=11 // pred_check
          %p270 = pneg %p116
        $region18: #{tpu_custom_call.1} parent=11 // pred_check_branch
          %272 = sbr.rel (%p270) target = $region20
        $region19: #{tpu_custom_call.1} parent=11 // pred_region
          _
        $region20: #{tpu_custom_call.1} parent=11 // pred_fallthru
          _
        // Predicated region
        $region21: #{tpu_custom_call.1} parent=11 // pred_check
          %p273 = pneg %p137
        $region22: #{tpu_custom_call.1} parent=11 // pred_check_branch
          %275 = sbr.rel (%p273) target = $region24
        $region23: #{tpu_custom_call.1} parent=11 // pred_region
          _
        $region24: #{tpu_custom_call.1} parent=11 // pred_fallthru
          _
        // Predicated region
        $region25: #{tpu_custom_call.1} parent=11 // pred_check
          %p276 = pneg %p158
        $region26: #{tpu_custom_call.1} parent=11 // pred_check_branch
          %278 = sbr.rel (%p276) target = $region28
        $region27: #{tpu_custom_call.1} parent=11 // pred_region
          _
        $region28: #{tpu_custom_call.1} parent=11 // pred_fallthru
          _
        // Predicated region
        $region29: #{tpu_custom_call.1} parent=11 // pred_check
          %p279 = pneg %p179
        $region30: #{tpu_custom_call.1} parent=11 // pred_check_branch
          %281 = sbr.rel (%p279) target = $region32
        $region31: #{tpu_custom_call.1} parent=11 // pred_region
          _
        $region32: #{tpu_custom_call.1} parent=11 // pred_fallthru
          _
        // Predicated region
        $region33: #{tpu_custom_call.1} parent=11 // pred_check
          %p282 = pneg %p200
        $region34: #{tpu_custom_call.1} parent=11 // pred_check_branch
          %284 = sbr.rel (%p282) target = $region36
        $region35: #{tpu_custom_call.1} parent=11 // pred_region
          _
        $region36: #{tpu_custom_call.1} parent=11 // pred_fallthru
          _
      $region12: #{tpu_custom_call.1} parent=5 // pred_fallthru
        _
      %p285 = scmp.lt.s32.totalorder %s22, 2
      // Predicated region
      $region37: #{tpu_custom_call.1} parent=5 // pred_check
        %p286 = pneg %p285
      $region38: #{tpu_custom_call.1} parent=5 // pred_check_branch
        %288 = sbr.rel (%p286) target = $region40
      $region39: #{tpu_custom_call.1} parent=5 // pred_region
        // Predicated region
        $region41: #{tpu_custom_call.1} parent=39 // pred_check
          %p289 = pneg %p42
        $region42: #{tpu_custom_call.1} parent=39 // pred_check_branch
          %291 = sbr.rel (%p289) target = $region44
        $region43: #{tpu_custom_call.1} parent=39 // pred_region
          %s292 = sand.u32 %s32, 1
          %s293 = sand.u32 %s32, 1
          %s294 = smul.addr %s293, 8
          %s295 = scalar_lea.vmem [#allocation2], %s294
          %s296 = smul.addr %s22, 4
          %s297 = scalar_lea.vmem %s0, %s296
          // Predicated region
          $region45: #{tpu_custom_call.1} parent=43 // pred_check
            _
          $region46: #{tpu_custom_call.1} parent=43 // pred_check_branch
            %299 = sbr.rel (0) target = $region48
          $region47: #{tpu_custom_call.1} parent=43 // pred_region
            // Predicated region
            $region49: #{tpu_custom_call.1} parent=47 // pred_check
              _
            $region50: #{tpu_custom_call.1} parent=47 // pred_check_branch
              %301 = sbr.rel target = $region52
            $region51: #{tpu_custom_call.1} parent=47 // pred_region
              // Predicated region
              $region64: #{tpu_custom_call.1} parent=51 // pred_check
                _
              $region65: #{tpu_custom_call.1} parent=51 // pred_check_branch
                %319 = sbr.rel (0) target = $region67
              $region66: #{tpu_custom_call.1} parent=51 // pred_region
                loop: start=0, step=1, limit=1
                $region68: #{tpu_custom_call.1} parent=66 // loop_pre_header
                  _
                $region69: #{tpu_custom_call.1} parent=66 // loop_header
                  %s321 = sphi 0, %s325
                  %p322 = scmp.ge.s32.totalorder %s321, 1
                  %s326 = sphi %s297, %s297
                  %s327 = sphi %s295, %s295
                $region70: #{tpu_custom_call.1} parent=66 // loop_header_branch
                  %324 = sbr.rel (%p322) target = $region74
                $region71: #{tpu_custom_call.1} parent=66 // loop_body
                  _
                $region72: #{tpu_custom_call.1} parent=66 // loop_footer
                  %s325 = sadd.s32 1, %s321
                $region73: #{tpu_custom_call.1} parent=66 // loop_footer_branch
                  %320 = sbr.rel target = $region69
                $region74: #{tpu_custom_call.1} parent=66 // loop_exit
                  _
                %s329 = ssub.s32 16, 1
                loop: start=0, step=1, limit=1
                $region75: #{tpu_custom_call.1} parent=66 // loop_pre_header
                  _
                $region76: #{tpu_custom_call.1} parent=66 // loop_header
                  %s331 = sphi 0, %s335
                  %p332 = scmp.ge.s32.totalorder %s331, 1
                  %s336 = sphi %s297, %s297
                  %s337 = sphi %s295, %s295
                $region77: #{tpu_custom_call.1} parent=66 // loop_header_branch
                  %334 = sbr.rel (%p332) target = $region81
                $region78: #{tpu_custom_call.1} parent=66 // loop_body
                  %v338 = vld [vmem:[%s336] sm:%s329]
                  %339 = vst [vmem:[%s337] sm:%s329] %v338
                  %v340 = vld [vmem:[%s336 + $0x8] sm:%s329]
                  %341 = vst [vmem:[%s337 + $0x4] sm:%s329] %v340
                $region79: #{tpu_custom_call.1} parent=66 // loop_footer
                  %s335 = sadd.s32 1, %s331
                $region80: #{tpu_custom_call.1} parent=66 // loop_footer_branch
                  %330 = sbr.rel target = $region76
                $region81: #{tpu_custom_call.1} parent=66 // loop_exit
                  _
              $region67: #{tpu_custom_call.1} parent=51 // pred_fallthru
                _
            $region52: #{tpu_custom_call.1} parent=47 // pred_fallthru
              _
            // Predicated region
            $region53: #{tpu_custom_call.1} parent=47 // pred_check
              _
            $region54: #{tpu_custom_call.1} parent=47 // pred_check_branch
              %303 = sbr.rel (0) target = $region56
            $region55: #{tpu_custom_call.1} parent=47 // pred_region
              %s305 = ssub.s32 16, 1
              loop: start=0, step=1, limit=1
              $region57: #{tpu_custom_call.1} parent=55 // loop_pre_header
                _
              $region58: #{tpu_custom_call.1} parent=55 // loop_header
                %s307 = sphi 0, %s311
                %p308 = scmp.ge.s32.totalorder %s307, 1
                %s312 = sphi %s297, %s297
                %s313 = sphi %s295, %s295
              $region59: #{tpu_custom_call.1} parent=55 // loop_header_branch
                %310 = sbr.rel (%p308) target = $region63
              $region60: #{tpu_custom_call.1} parent=55 // loop_body
                %v314 = vld [vmem:[%s312] sm:%s305]
                %315 = vst [vmem:[%s313] sm:%s305] %v314
                %v316 = vld [vmem:[%s312 + $0x8] sm:%s305]
                %317 = vst [vmem:[%s313 + $0x4] sm:%s305] %v316
              $region61: #{tpu_custom_call.1} parent=55 // loop_footer
                %s311 = sadd.s32 1, %s307
              $region62: #{tpu_custom_call.1} parent=55 // loop_footer_branch
                %306 = sbr.rel target = $region58
              $region63: #{tpu_custom_call.1} parent=55 // loop_exit
                _
            $region56: #{tpu_custom_call.1} parent=47 // pred_fallthru
              _
          $region48: #{tpu_custom_call.1} parent=43 // pred_fallthru
            _
          %342 = vnop
        $region44: #{tpu_custom_call.1} parent=39 // pred_fallthru
          _
        // Predicated region
        $region82: #{tpu_custom_call.1} parent=39 // pred_check
          %p343 = pneg %p68
        $region83: #{tpu_custom_call.1} parent=39 // pred_check_branch
          %345 = sbr.rel (%p343) target = $region85
        $region84: #{tpu_custom_call.1} parent=39 // pred_region
          %p346 = scmp.lt.s32.totalorder %s22, 1
          %s347 = scalar_select %p346, %s22, 1
          %s348 = smul.addr %s347, 8
          %s349 = scalar_lea.vmem %s1, %s348
        $region85: #{tpu_custom_call.1} parent=39 // pred_fallthru
          _
      $region40: #{tpu_custom_call.1} parent=5 // pred_fallthru
        _
      %p350 = scmp.le.s32.totalorder 1, %s22
      %p351 = scmp.lt.s32.totalorder %s22, 3
      %p352 = pnand %p350, %p351
      %p353 = pneg %p352
      // Predicated region
      $region86: #{tpu_custom_call.1} parent=5 // pred_check
        _
      $region87: #{tpu_custom_call.1} parent=5 // pred_check_branch
        %355 = sbr.rel (%p352) target = $region89
      $region88: #{tpu_custom_call.1} parent=5 // pred_region
        %s356 = ssub.s32 %s22, 1
        %s357 = sand.u32 %s35, 1
        %s358 = sand.u32 %s35, 1
        %s359 = smul.addr %s358, 8
        %s360 = scalar_lea.vmem [#allocation2], %s359
        // Predicated region
        $region90: #{tpu_custom_call.1} parent=88 // pred_check
          %p361 = pneg %p48
        $region91: #{tpu_custom_call.1} parent=88 // pred_check_branch
          %363 = sbr.rel (%p361) target = $region93
        $region92: #{tpu_custom_call.1} parent=88 // pred_region
          _
        $region93: #{tpu_custom_call.1} parent=88 // pred_fallthru
          _
        %s364 = sand.u32 %s35, 1
        %s365 = sand.u32 %s35, 1
        %s366 = smul.addr %s365, 8
        %s367 = scalar_lea.vmem [#allocation2], %s366
        %p368 = pneg %p48
        %p369 = pneg %p45
        %p370 = scmp.lt.s32.totalorder %s27, 1
        %s371 = scalar_select %p370, %s27, 1
        %s372 = smul.addr %s371, 8
        %s373 = scalar_lea.vmem %s1, %s372
        %p374 = pneg %p74
        %p375 = pneg %p71
        %p376 = pneg %p95
        %p377 = pneg %p92
        %p378 = pneg %p116
        %p379 = pneg %p113
        %p380 = pneg %p137
        %p381 = pneg %p134
        %p382 = pneg %p158
        %p383 = pneg %p155
        %p384 = pneg %p179
        %p385 = pneg %p176
        %p386 = pneg %p200
        %p387 = pneg %p197
        %p388 = pneg %p226
        %p389 = pneg %p223
        %s390 = sand.u32 %s213, 1
        %s391 = scalar_lea.sflag [#allocation4], %s390
        %s392 = sand.u32 %s213, 1
        %s393 = smul.addr %s392, 8
        %s394 = scalar_lea.vmem [#allocation3], %s393
        %p395 = pneg %p252
        %p396 = pneg %p249
        %s397 = sand.u32 %s239, 1
        %s398 = scalar_lea.sflag [#allocation6], %s397
        %s399 = sand.u32 %s239, 1
        %s400 = scalar_lea.vmem [#allocation5], %s399
        %p401 = scmp.lt.s32.totalorder %s27, 1
        %s402 = scalar_select %p401, %s27, 1
        %s403 = smul.addr %s402, 8
        %s404 = scalar_lea.vmem %s1, %s403
        %v406 = vld [vmem:[%s360] sm:$0xf]
        %v407 = vld [vmem:[%s360 + $0x4] sm:$0xf]
        %v408 = vld [vmem:[%s2] sm:$0xf]
        %v409 = vld [vmem:[%s2 + $0x4] sm:$0xf]
        %v410 = vld [vmem:[%s2 + $0x8] sm:$0xf]
        %v411 = vld [vmem:[%s2 + $0xc] sm:$0xf]
        %v412 = vld [vmem:[%s3] sm:$0xff]
        %v413 = vld [vmem:[%s3 + $0x8] sm:$0xff]
        %v414 = vld [vmem:[%s3 + $0x10] sm:$0xff]
        %v415 = vld [vmem:[%s3 + $0x18] sm:$0xff]
        %417 = vset.pattern.permute.xlu0 0
        %418 = vperm.xlu0 %417, %v412
        %v419 = vpop.permute.xlu0 %418
        %422 = vset.pattern.permute.xlu0 0
        %423 = vperm.xlu0 %422, %v413
        %v424 = vpop.permute.xlu0 %423
        %427 = vset.pattern.permute.xlu0 0
        %428 = vperm.xlu0 %427, %v414
        %v429 = vpop.permute.xlu0 %428
        %432 = vset.pattern.permute.xlu0 0
        %433 = vperm.xlu0 %432, %v415
        %v434 = vpop.permute.xlu0 %433
        %v440 = vunpack.c.l.b16 %v408
        %v441 = vunpack.c.l.b16 %v409
        %v442 = vunpack.c.l.b16 %v410
        %v443 = vunpack.c.l.b16 %v411
        %v444 = vpack.c.b16 %v441, %v440
        %v445 = vpack.c.b16 %v443, %v442
        %v448 = vunpack.c.l.b16 %v406
        %v449 = vunpack.c.l.b16 %v407
        %v450 = vpack.c.b16 %v449, %v448
        %vm452 = vcmask 130048
        %v454 = vsel %vm452, %v444, 0
        %v457 = vsel %vm452, %v445, 0
        %459 = vmatprep.subr.bf16.mxu0 0
        %460 = vmatpush1.bf16.msra.mxu0 0
        %461 = vmatprep.subr.bf16.mxu0 0
        %462 = vmatpush1.bf16.msra.mxu0 0
        %463 = vmatprep.subr.bf16.mxu0 0
        %464 = vmatpush1.bf16.msra.mxu0 0
        %465 = vmatprep.subr.bf16.mxu0 0
        %466 = vmatpush1.bf16.msra.mxu0 0
        %467 = vmatprep.subr.bf16.mxu0 0
        %468 = vmatpush1.bf16.msra.mxu0 0
        %469 = vmatprep.subr.bf16.mxu0 0
        %470 = vmatpush1.bf16.msra.mxu0 0
        %471 = vmatprep.subr.bf16.mxu0 0
        %472 = vmatpush1.bf16.msra.mxu0 0
        %473 = vmatprep.subr.bf16.mxu0 0
        %474 = vmatpush1.bf16.msra.mxu0 %v450
        %475 = vmatprep.subr.bf16.mxu0 0
        %476 = vmatpush2.bf16.msra.mxu0 0
        %477 = vmatprep.subr.bf16.mxu0 0
        %478 = vmatpush2.bf16.msra.mxu0 0
        %479 = vmatprep.subr.bf16.mxu0 0
        %480 = vmatpush2.bf16.msra.mxu0 0
        %481 = vmatprep.subr.bf16.mxu0 0
        %482 = vmatpush2.bf16.msra.mxu0 0
        %483 = vmatprep.subr.bf16.mxu0 0
        %484 = vmatpush2.bf16.msra.mxu0 0
        %485 = vmatprep.subr.bf16.mxu0 0
        %486 = vmatpush2.bf16.msra.mxu0 0
        %487 = vmatprep.subr.bf16.mxu0 0
        %488 = vmatpush2.bf16.msra.mxu0 0
        %489 = vmatprep.subr.bf16.mxu0 0
        %490 = vmatpush2.bf16.msra.mxu0 0
        %491 = vmatprep.mubr.bf16.mxu0 0
        %492 = vmatmul.mubr.bf16.gmra.mxu0 %v454
        %v493 = vpop.f32.mrf.mxu0
        %v494 = vadd.f32 %v419, %v493
        %v495 = vpop.f32.mrf.mxu0
        %v496 = vpop.f32.mrf.mxu0
        %v497 = vadd.f32 %v424, %v496
        %v498 = vpop.f32.mrf.mxu0
        %499 = vmatprep.mubr.bf16.mxu0 0
        %500 = vmatmul.mubr.bf16.gmra.mxu0 %v457
        %v501 = vpop.f32.mrf.mxu0
        %v502 = vadd.f32 %v429, %v501
        %v503 = vpop.f32.mrf.mxu0
        %v504 = vpop.f32.mrf.mxu0
        %v505 = vadd.f32 %v434, %v504
        %v506 = vpop.f32.mrf.mxu0
        %507 = vdwg.mxu0
        %v508 = vmax.f32 %v494, 0.0
        %v509 = vmax.f32 %v497, 0.0
        %v510 = vmax.f32 %v502, 0.0
        %v511 = vmax.f32 %v505, 0.0
        %v512 = vld [vmem:[%s4] sm:$0xf]
        %v513 = vld [vmem:[%s4 + $0x4] sm:$0xf]
        %v514 = vld [vmem:[%s4 + $0x8] sm:$0xf]
        %v515 = vld [vmem:[%s4 + $0xc] sm:$0xf]
        %v516 = vpack.c.bf16 %v509, %v508
        %v517 = vpack.c.bf16 %v511, %v510
        %v518 = vld [vmem:[%s5] sm:$0xff]
        %v519 = vld [vmem:[%s5 + $0x8] sm:$0xff]
        %v520 = vld [vmem:[%s5 + $0x10] sm:$0xff]
        %v521 = vld [vmem:[%s5 + $0x18] sm:$0xff]
        %523 = vset.pattern.permute.xlu0 0
        %524 = vperm.xlu0 %523, %v518
        %v525 = vpop.permute.xlu0 %524
        %528 = vset.pattern.permute.xlu0 0
        %529 = vperm.xlu0 %528, %v519
        %v530 = vpop.permute.xlu0 %529
        %533 = vset.pattern.permute.xlu0 0
        %534 = vperm.xlu0 %533, %v520
        %v535 = vpop.permute.xlu0 %534
        %538 = vset.pattern.permute.xlu0 0
        %539 = vperm.xlu0 %538, %v521
        %v540 = vpop.permute.xlu0 %539
        %v546 = vunpack.c.l.b16 %v512
        %v547 = vunpack.c.l.b16 %v513
        %v548 = vunpack.c.l.b16 %v514
        %v549 = vunpack.c.l.b16 %v515
        %v550 = vpack.c.b16 %v547, %v546
        %v551 = vpack.c.b16 %v549, %v548
        %vm552 = vcmask 261120
        %v554 = vsel %vm552, %v550, 0
        %v557 = vsel %vm552, %v551, 0
        %559 = vmatprep.subr.bf16.mxu0 0
        %560 = vmatpush1.bf16.msra.mxu0 0
        %561 = vmatprep.subr.bf16.mxu0 0
        %562 = vmatpush1.bf16.msra.mxu0 0
        %563 = vmatprep.subr.bf16.mxu0 0
        %564 = vmatpush1.bf16.msra.mxu0 0
        %565 = vmatprep.subr.bf16.mxu0 0
        %566 = vmatpush1.bf16.msra.mxu0 0
        %567 = vmatprep.subr.bf16.mxu0 0
        %568 = vmatpush1.bf16.msra.mxu0 0
        %569 = vmatprep.subr.bf16.mxu0 0
        %570 = vmatpush1.bf16.msra.mxu0 0
        %571 = vmatprep.subr.bf16.mxu0 0
        %572 = vmatpush1.bf16.msra.mxu0 %v517
        %573 = vmatprep.subr.bf16.mxu0 0
        %574 = vmatpush1.bf16.msra.mxu0 %v516
        %575 = vmatprep.subr.bf16.mxu0 0
        %576 = vmatpush2.bf16.msra.mxu0 0
        %577 = vmatprep.subr.bf16.mxu0 0
        %578 = vmatpush2.bf16.msra.mxu0 0
        %579 = vmatprep.subr.bf16.mxu0 0
        %580 = vmatpush2.bf16.msra.mxu0 0
        %581 = vmatprep.subr.bf16.mxu0 0
        %582 = vmatpush2.bf16.msra.mxu0 0
        %583 = vmatprep.subr.bf16.mxu0 0
        %584 = vmatpush2.bf16.msra.mxu0 0
        %585 = vmatprep.subr.bf16.mxu0 0
        %586 = vmatpush2.bf16.msra.mxu0 0
        %587 = vmatprep.subr.bf16.mxu0 0
        %588 = vmatpush2.bf16.msra.mxu0 0
        %589 = vmatprep.subr.bf16.mxu0 0
        %590 = vmatpush2.bf16.msra.mxu0 0
        %591 = vmatprep.mubr.bf16.mxu0 0
        %592 = vmatmul.mubr.bf16.gmra.mxu0 %v554
        %v593 = vpop.f32.mrf.mxu0
        %v594 = vadd.f32 %v525, %v593
        %v595 = vpop.f32.mrf.mxu0
        %v596 = vpop.f32.mrf.mxu0
        %v597 = vadd.f32 %v530, %v596
        %v598 = vpop.f32.mrf.mxu0
        %599 = vmatprep.mubr.bf16.mxu0 0
        %600 = vmatmul.mubr.bf16.gmra.mxu0 %v557
        %v601 = vpop.f32.mrf.mxu0
        %v602 = vadd.f32 %v535, %v601
        %v603 = vpop.f32.mrf.mxu0
        %v604 = vpop.f32.mrf.mxu0
        %v605 = vadd.f32 %v540, %v604
        %v606 = vpop.f32.mrf.mxu0
        %607 = vdwg.mxu0
        %v608 = vmax.f32 %v594, 0.0
        %v609 = vmax.f32 %v597, 0.0
        %v610 = vmax.f32 %v602, 0.0
        %v611 = vmax.f32 %v605, 0.0
        %v612 = vld [vmem:[%s6] sm:$0xf]
        %v613 = vpack.c.bf16 %v609, %v608
        %v614 = vpack.c.bf16 %v611, %v610
        %v615 = vld [vmem:[%s7] sm:$0xff]
        %617 = vset.pattern.permute.xlu0 0
        %618 = vperm.xlu0 %617, %v615
        %v619 = vpop.permute.xlu0 %618
        %v622 = vsel %vm552, %v612, 0
        %624 = vmatprep.subr.bf16.mxu0 0
        %625 = vmatpush1.bf16.msra.mxu0 0
        %626 = vmatprep.subr.bf16.mxu0 0
        %627 = vmatpush1.bf16.msra.mxu0 0
        %628 = vmatprep.subr.bf16.mxu0 0
        %629 = vmatpush1.bf16.msra.mxu0 0
        %630 = vmatprep.subr.bf16.mxu0 0
        %631 = vmatpush1.bf16.msra.mxu0 0
        %632 = vmatprep.subr.bf16.mxu0 0
        %633 = vmatpush1.bf16.msra.mxu0 0
        %634 = vmatprep.subr.bf16.mxu0 0
        %635 = vmatpush1.bf16.msra.mxu0 0
        %636 = vmatprep.subr.bf16.mxu0 0
        %637 = vmatpush1.bf16.msra.mxu0 %v614
        %638 = vmatprep.subr.bf16.mxu0 0
        %639 = vmatpush1.bf16.msra.mxu0 %v613
        %640 = vmatprep.subr.bf16.mxu0 0
        %641 = vmatpush2.bf16.msra.mxu0 0
        %642 = vmatprep.subr.bf16.mxu0 0
        %643 = vmatpush2.bf16.msra.mxu0 0
        %644 = vmatprep.subr.bf16.mxu0 0
        %645 = vmatpush2.bf16.msra.mxu0 0
        %646 = vmatprep.subr.bf16.mxu0 0
        %647 = vmatpush2.bf16.msra.mxu0 0
        %648 = vmatprep.subr.bf16.mxu0 0
        %649 = vmatpush2.bf16.msra.mxu0 0
        %650 = vmatprep.subr.bf16.mxu0 0
        %651 = vmatpush2.bf16.msra.mxu0 0
        %652 = vmatprep.subr.bf16.mxu0 0
        %653 = vmatpush2.bf16.msra.mxu0 0
        %654 = vmatprep.subr.bf16.mxu0 0
        %655 = vmatpush2.bf16.msra.mxu0 0
        %656 = vmatprep.mubr.bf16.mxu0 0
        %657 = vmatmul.mubr.bf16.gmra.mxu0 %v622
        %v658 = vpop.f32.mrf.mxu0
        %v659 = vadd.f32 %v619, %v658
        %v660 = vpop.f32.mrf.mxu0
        %v661 = vpop.f32.mrf.mxu0
        %v662 = vpop.f32.mrf.mxu0
        %663 = vdwg.mxu0
        %664 = vst [vmem:[%s394] sm:$0xff] %v659
        %v665 = vld [vmem:[%s404] sm:$0xff]
        %v666 = vadd.f32 %v659, %v665
        %v667 = vlaneseq
        %v668 = vshrl.u32 %v667, 7
        %v669 = vrot.slane %v666, 4
        %v670 = vmax.f32 %v666, %v669
        %v671 = vrot.slane %v670, 2
        %v672 = vmax.f32 %v670, %v671
        %v673 = vrot.slane %v672, 1
        %v674 = vmax.f32 %v672, %v673
        %vm675 = vcmp.ge.f32.partialorder %v666, %v674
        %v676 = vsel %vm675, %v668, 8
        %v677 = vrot.slane %v676, 4
        %vm678 = vcmp.lt.s32.totalorder %v676, %v677
        %v679 = vsel %vm678, %v676, %v677
        %v680 = vrot.slane %v679, 2
        %vm681 = vcmp.lt.s32.totalorder %v679, %v680
        %v682 = vsel %vm681, %v679, %v680
        %v683 = vrot.slane %v682, 1
        %vm684 = vcmp.lt.s32.totalorder %v682, %v683
        %v685 = vsel %vm684, %v682, %v683
        %686 = vst [vmem:[%s400] sm:$0x1] %v685
        %s687 = sand.u32 %s213, 1
        %s688 = scalar_lea.sflag [#allocation4], %s687
        %s689 = sand.u32 %s213, 1
        %s690 = smul.addr %s689, 8
        %s691 = scalar_lea.vmem [#allocation3], %s690
        %s692 = sand.u32 %s239, 1
        %s693 = scalar_lea.sflag [#allocation6], %s692
        %s694 = sand.u32 %s239, 1
        %s695 = scalar_lea.vmem [#allocation5], %s694
        // Predicated region
        $region94: #{tpu_custom_call.1} parent=88 // pred_check
          %p696 = pneg %p223
        $region95: #{tpu_custom_call.1} parent=88 // pred_check_branch
          %698 = sbr.rel (%p696) target = $region97
        $region96: #{tpu_custom_call.1} parent=88 // pred_region
          %s700 = ssub.s32 128, 128
          %701 = vsyncadd %s688, %s700
          %s702 = smul.addr %s27, 128
          %s703 = scalar_lea.hbm %s8, %s702
          %s705 = sshll.u32 %s691, 4
          %s706 = int_to_ptr.vmem [resolvable:$true] %s705
          %708 = dma.vmem_to_hbm [thread:$0]  %s706, 128, %s703, %s688
        $region97: #{tpu_custom_call.1} parent=88 // pred_fallthru
          _
        // Predicated region
        $region98: #{tpu_custom_call.1} parent=88 // pred_check
          %p709 = pneg %p249
        $region99: #{tpu_custom_call.1} parent=88 // pred_check_branch
          %711 = sbr.rel (%p709) target = $region101
        $region100: #{tpu_custom_call.1} parent=88 // pred_region
          %s713 = ssub.s32 16, 16
          %714 = vsyncadd %s693, %s713
          %s715 = smul.addr %s27, 16
          %s716 = scalar_lea.hbm %s9, %s715
          %s718 = sshll.u32 %s695, 4
          %s719 = int_to_ptr.vmem [resolvable:$true] %s718
          %721 = dma.vmem_to_hbm [thread:$0]  %s719, 16, %s716, %s693
        $region101: #{tpu_custom_call.1} parent=88 // pred_fallthru
          _
      $region89: #{tpu_custom_call.1} parent=5 // pred_fallthru
        _
      %p722 = scmp.le.s32.totalorder 2, %s22
      // Predicated region
      $region102: #{tpu_custom_call.1} parent=5 // pred_check
        %p723 = pneg %p722
      $region103: #{tpu_custom_call.1} parent=5 // pred_check_branch
        %725 = sbr.rel (%p723) target = $region105
      $region104: #{tpu_custom_call.1} parent=5 // pred_region
        %s726 = ssub.s32 %s22, 2
        // Predicated region
        $region106: #{tpu_custom_call.1} parent=104 // pred_check
          %p727 = pneg %p229
        $region107: #{tpu_custom_call.1} parent=104 // pred_check_branch
          %729 = sbr.rel (%p727) target = $region109
        $region108: #{tpu_custom_call.1} parent=104 // pred_region
          %s730 = sand.u32 %s214, 1
          %s731 = scalar_lea.sflag [#allocation4], %s730
          %s732 = sand.u32 %s214, 1
          %s733 = smul.addr %s732, 8
          %s734 = scalar_lea.vmem [#allocation3], %s733
          %735 = dma.done %s731, 128
        $region109: #{tpu_custom_call.1} parent=104 // pred_fallthru
          _
        // Predicated region
        $region110: #{tpu_custom_call.1} parent=104 // pred_check
          %p736 = pneg %p255
        $region111: #{tpu_custom_call.1} parent=104 // pred_check_branch
          %738 = sbr.rel (%p736) target = $region113
        $region112: #{tpu_custom_call.1} parent=104 // pred_region
          %s739 = sand.u32 %s240, 1
          %s740 = scalar_lea.sflag [#allocation6], %s739
          %s741 = sand.u32 %s240, 1
          %s742 = scalar_lea.vmem [#allocation5], %s741
          %743 = dma.done %s740, 16
        $region113: #{tpu_custom_call.1} parent=104 // pred_fallthru
          _
      $region105: #{tpu_custom_call.1} parent=5 // pred_fallthru
        _
    $region6: #{tpu_custom_call.1} parent=1 // loop_footer
      %s26 = sadd.s32 1, %s22
    $region7: #{tpu_custom_call.1} parent=1 // loop_footer_branch
      %21 = sbr.rel target = $region3
    $region8: #{tpu_custom_call.1} parent=1 // loop_exit
      _
    %744 = vsyncpa [#allocation4], 1
    %s745 = scalar_lea.sflag [#allocation4], 1
    %746 = vsyncpa %s745, 1
    %747 = vsyncpa [#allocation6], 1
    %s748 = scalar_lea.sflag [#allocation6], 1
    %749 = vsyncpa %s748, 1

</llo_original>
